<compile_context>
chip_gen: v6e
topology: v6e:2x2x1
jax: 0.10.0
libtpu: 0.0.40
codegen_flags: <defaults>
</compile_context>

<pallas_src>
import functools

import jax
import jax.numpy as jnp
from jax.experimental import pallas as pl
from jax.experimental.pallas import tpu as pltpu


GAMMA = 2.0  # FocalLoss default


def _focal_loss_kernel(logits_ref, targets_ref, out_ref, *, total_n, gamma):
    # logits_ref : (TILE_N, C)  native dtype, VMEM
    # targets_ref: (1, TILE_N)  int32, VMEM (lane-dense)
    # out_ref    : (1, 1)       float32, VMEM (resident accumulator / result)
    i = pl.program_id(0)

    @pl.when(i == 0)
    def _init():
        out_ref[...] = jnp.zeros_like(out_ref)

    logits = logits_ref[...].astype(jnp.float32)   # cast in-kernel (VPU filler)
    tn, c = logits.shape

    # Numerically-stable log-sum-exp over the class (lane) axis.
    m = jnp.max(logits, axis=-1, keepdims=True)
    shifted = logits - m
    lse = jnp.log(jnp.sum(jnp.exp(shifted), axis=-1, keepdims=True))   # (tn,1)

    # nll_i = lse_i - shifted[i, target_i]; gather via compare + select
    # (no dynamic gather on TPU), without materializing log_probs.
    tgt_col = jnp.transpose(targets_ref[...])                          # (tn,1)
    cls_row = jax.lax.broadcasted_iota(jnp.int32, (1, c), 1)           # (1, C)
    tgt_shift = jnp.sum(jnp.where(cls_row == tgt_col, shifted, 0.0),
                        axis=-1, keepdims=True)                        # (tn,1)
    nll = lse - tgt_shift                                              # (tn,1)

    if total_n % tn != 0:
        # Mask garbage rows of the padded last tile BEFORE any cross-row sum.
        row_ids = i * tn + jax.lax.broadcasted_iota(jnp.int32, (tn, 1), 0)
        nll = jnp.where(row_ids < total_n, nll, 0.0)

    # Vector-side running sum in the resident (1,1) output block.
    out_ref[...] += jnp.sum(nll, axis=0, keepdims=True)

    @pl.when(i == pl.num_programs(0) - 1)
    def _finalize():
        ce = out_ref[...] * jnp.float32(1.0 / total_n)   # reduction='mean'
        pt = jnp.exp(-ce)
        one_minus_pt = 1.0 - pt
        if gamma == 2.0:
            focal_w = one_minus_pt * one_minus_pt         # cheap VPU mul
        else:
            focal_w = one_minus_pt ** jnp.float32(gamma)
        out_ref[...] = focal_w * ce


def _tpu_vmem_capacity_bytes():
    """Physical VMEM per core; conservative (v7x-sized) fallback if the query
    is unavailable."""
    try:
        return int(pltpu.get_tpu_info().vmem_capacity_bytes)
    except Exception:
        return 64 << 20


def _choose_tile_n(n, c, itemsize, per_block_target_bytes):
    """Largest batch tile whose *lane-padded* logits block stays near the
    per-block target.  The class axis pads to a multiple of 128 lanes."""
    padded_c = ((c + 127) // 128) * 128
    row_bytes = padded_c * itemsize
    rows = per_block_target_bytes // max(1, row_bytes)
    if rows >= n:
        return n                            # single tile == full dim, legal
    # Multiple of 128 keeps both the (tile_n, C) sublane rule and the
    # lane-dense (1, tile_n) targets block rule satisfied.
    rows = max(128, (rows // 128) * 128)
    return min(rows, n)


def focal_loss(logits, targets, *, gamma=GAMMA, tile_n=None):
    """logits: (N, C) float (any dtype); targets: (N,) int class indices.
    Returns the scalar focal loss (float32)."""
    n, c = logits.shape
    # gamma must be a static Python number (module fixes it at construction).
    gamma = float(gamma)

    targets_row = targets.reshape(1, n).astype(jnp.int32)   # lane-dense stream

    itemsize = jnp.dtype(logits.dtype).itemsize
    vmem_cap = _tpu_vmem_capacity_bytes()
    # ~8 MiB logits blocks already sit past the DMA-efficiency knee; allow
    # ~16 MiB where VMEM is plentiful (v5e/v6e, 128 MiB), keep 8 MiB on v7x.
    per_block_target = (16 << 20) if vmem_cap >= (100 << 20) else (8 << 20)
    if tile_n is None:
        tile_n = _choose_tile_n(n, c, itemsize, per_block_target)
    grid = (pl.cdiv(n, tile_n),)

    # VMEM budget from *padded* footprints: 2 buffers per input + headroom,
    # clamped below the physical per-chip capacity.
    padded_c = ((c + 127) // 128) * 128
    logits_block_bytes = tile_n * padded_c * itemsize
    targets_block_bytes = 8 * tile_n * 4          # (1, tile_n) pads to 8 sublanes
    vmem_request = 2 * (logits_block_bytes + targets_block_bytes) + (2 << 20)
    vmem_limit = int(min(max(vmem_request, 16 << 20), vmem_cap - (8 << 20)))

    kernel = functools.partial(_focal_loss_kernel, total_n=n, gamma=gamma)

    out = pl.pallas_call(
        kernel,
        out_shape=jax.ShapeDtypeStruct((1, 1), jnp.float32),
        grid_spec=pltpu.PrefetchScalarGridSpec(
            num_scalar_prefetch=0,
            grid=grid,
            in_specs=[
                pl.BlockSpec((tile_n, c), lambda i: (i, 0)),
                pl.BlockSpec((1, tile_n), lambda i: (0, i)),
            ],
            out_specs=pl.BlockSpec((1, 1), lambda i: (0, 0)),
        ),
        compiler_params=pltpu.CompilerParams(
            dimension_semantics=("arbitrary",),   # reduction over batch tiles
            vmem_limit_bytes=vmem_limit,
        ),
    )(logits, targets_row)   # logits streamed in native dtype (cast in-kernel)
    return out[0, 0]


def _focal_loss_ref(logits, targets, gamma=GAMMA):
    # Pure-JAX reference mirroring torch.nn.CrossEntropyLoss + focal transform.
    logp = jax.nn.log_softmax(logits.astype(jnp.float32), axis=-1)
    nll = -jnp.take_along_axis(logp, targets[:, None].astype(jnp.int32),
                               axis=-1)[:, 0]
    ce = jnp.mean(nll)
    pt = jnp.exp(-ce)
    return (1.0 - pt) ** gamma * ce


if __name__ == "__main__":
    key = jax.random.PRNGKey(0)
    k1, k2, k3, k4 = jax.random.split(key, 4)

    # Small single-tile case: batch of 8 samples, 32 classes.
    N, C = 8, 32
    logits = jax.random.normal(k1, (N, C), dtype=jnp.float32)
    targets = jax.random.randint(k2, (N,), 0, C, dtype=jnp.int32)
    out = jax.block_until_ready(focal_loss(logits, targets))
    ref = _focal_loss_ref(logits, targets)
    assert jnp.allclose(out, ref, rtol=1e-5, atol=1e-5), (out, ref)

    # Multi-tile case (exercises streaming, padded-last-tile masking and the
    # resident accumulator) via an explicit small tile override.
    N2, C2 = 300, 32
    logits2 = jax.random.normal(k3, (N2, C2), dtype=jnp.float32)
    targets2 = jax.random.randint(k4, (N2,), 0, C2, dtype=jnp.int32)
    out2 = jax.block_until_ready(focal_loss(logits2, targets2, tile_n=128))
    ref2 = _focal_loss_ref(logits2, targets2)
    assert jnp.allclose(out2, ref2, rtol=1e-5, atol=1e-5), (out2, ref2)

    print("KERNEL_OK")
</pallas_src>

<mosaic_0001>
module attributes {stable_mosaic.version = 11 : i64} {
  func.func @_focal_loss_kernel(%arg0: i32, %arg1: memref<8x32xf32, #tpu.memory_space<vmem>>, %arg2: memref<1x8xi32, #tpu.memory_space<vmem>>, %arg3: memref<1x1xf32, #tpu.memory_space<vmem>>) attributes {dimension_semantics = [#tpu.dimension_semantics<arbitrary>], iteration_bounds = array<i64: 1>, scalar_prefetch = 0 : i64, scratch_operands = 0 : i64, tpu.core_type = #tpu.core_type<tc>, window_params = [{transform_indices = @transform_0, window_bounds = array<i64: 8, 32>}, {transform_indices = @transform_1, window_bounds = array<i64: 1, 8>}, {pipeline_mode = #tpu.pipeline_mode<synchronous>, transform_indices = @transform_2, window_bounds = array<i64: 1, 1>}]} {
    %c0_i32 = arith.constant 0 : i32
    %0 = arith.cmpi eq, %arg0, %c0_i32 : i32
    %1 = arith.extui %0 : i1 to i32
    %c0_i32_0 = arith.constant 0 : i32
    %2 = arith.cmpi ne, %1, %c0_i32_0 : i32
    scf.if %2 {
      %cst_14 = arith.constant 0.000000e+00 : f32
      %31 = vector.broadcast %cst_14 : f32 to vector<1x1xf32>
      %c0_15 = arith.constant 0 : index
      %c0_16 = arith.constant 0 : index
      %32 = vector.load %arg3[%c0_15, %c0_16] : memref<1x1xf32, #tpu.memory_space<vmem>>, vector<1x1xf32>
      tpu.vector_store %arg3[%c0_15, %c0_16], %31 {strides = array<i32>} : memref<1x1xf32, #tpu.memory_space<vmem>>, vector<1x1xf32>,
    } else {
    }
    %c0 = arith.constant 0 : index
    %c0_1 = arith.constant 0 : index
    %3 = vector.load %arg1[%c0, %c0_1] : memref<8x32xf32, #tpu.memory_space<vmem>>, vector<8x32xf32>
    %cst = arith.constant dense<0xFF800000> : vector<8xf32>
    %4 = vector.multi_reduction <maximumf>, %3, %cst [1] : vector<8x32xf32> to vector<8xf32>
    %5 = vector.shape_cast %4 : vector<8xf32> to vector<8x1xf32>
    %6 = vector.broadcast %5 : vector<8x1xf32> to vector<8x32xf32>
    %7 = arith.subf %3, %6 : vector<8x32xf32>
    %8 = math.exp %7 : vector<8x32xf32>
    %cst_2 = arith.constant dense<0.000000e+00> : vector<8xf32>
    %9 = vector.multi_reduction <add>, %8, %cst_2 [1] : vector<8x32xf32> to vector<8xf32>
    %10 = vector.shape_cast %9 : vector<8xf32> to vector<8x1xf32>
    %11 = math.log %10 : vector<8x1xf32>
    %c0_3 = arith.constant 0 : index
    %c0_4 = arith.constant 0 : index
    %12 = vector.load %arg2[%c0_3, %c0_4] : memref<1x8xi32, #tpu.memory_space<vmem>>, vector<1x8xi32>
    %13 = tpu.transpose %12, [1, 0] : vector<1x8xi32> -> vector<8x1xi32>
    %14 = tpu.iota {dimensions = array<i32: 1>} : vector<1x32xi32>
    %15 = vector.broadcast %14 : vector<1x32xi32> to vector<8x32xi32>
    %16 = vector.broadcast %13 : vector<8x1xi32> to vector<8x32xi32>
    %17 = arith.cmpi eq, %15, %16 : vector<8x32xi32>
    %cst_5 = arith.constant 0.000000e+00 : f32
    %18 = vector.broadcast %cst_5 : f32 to vector<8x32xf32>
    %19 = arith.select %17, %7, %18 : vector<8x32xi1>, vector<8x32xf32>
    %cst_6 = arith.constant dense<0.000000e+00> : vector<8xf32>
    %20 = vector.multi_reduction <add>, %19, %cst_6 [1] : vector<8x32xf32> to vector<8xf32>
    %21 = vector.shape_cast %20 : vector<8xf32> to vector<8x1xf32>
    %22 = arith.subf %11, %21 : vector<8x1xf32>
    %c0_7 = arith.constant 0 : index
    %c0_8 = arith.constant 0 : index
    %23 = vector.load %arg3[%c0_7, %c0_8] : memref<1x1xf32, #tpu.memory_space<vmem>>, vector<1x1xf32>
    %cst_9 = arith.constant dense<0.000000e+00> : vector<1xf32>
    %24 = vector.multi_reduction <add>, %22, %cst_9 [0] : vector<8x1xf32> to vector<1xf32>
    %25 = vector.shape_cast %24 : vector<1xf32> to vector<1x1xf32>
    %26 = arith.addf %23, %25 : vector<1x1xf32>
    %c0_10 = arith.constant 0 : index
    %c0_11 = arith.constant 0 : index
    %27 = vector.load %arg3[%c0_10, %c0_11] : memref<1x1xf32, #tpu.memory_space<vmem>>, vector<1x1xf32>
    tpu.vector_store %arg3[%c0_10, %c0_11], %26 {strides = array<i32>} : memref<1x1xf32, #tpu.memory_space<vmem>>, vector<1x1xf32>,
    %c0_i32_12 = arith.constant 0 : i32
    %28 = arith.cmpi eq, %arg0, %c0_i32_12 : i32
    %29 = arith.extui %28 : i1 to i32
    %c0_i32_13 = arith.constant 0 : i32
    %30 = arith.cmpi ne, %29, %c0_i32_13 : i32
    scf.if %30 {
      %c0_14 = arith.constant 0 : index
      %c0_15 = arith.constant 0 : index
      %31 = vector.load %arg3[%c0_14, %c0_15] : memref<1x1xf32, #tpu.memory_space<vmem>>, vector<1x1xf32>
      %cst_16 = arith.constant 1.250000e-01 : f32
      %32 = vector.broadcast %cst_16 : f32 to vector<1x1xf32>
      %33 = arith.mulf %31, %32 : vector<1x1xf32>
      %cst_17 = arith.constant 0.000000e+00 : f32
      %34 = vector.broadcast %cst_17 : f32 to vector<1x1xf32>
      %35 = arith.subf %34, %33 : vector<1x1xf32>
      %36 = math.exp %35 : vector<1x1xf32>
      %cst_18 = arith.constant 1.000000e+00 : f32
      %37 = vector.broadcast %cst_18 : f32 to vector<1x1xf32>
      %38 = arith.subf %37, %36 : vector<1x1xf32>
      %39 = arith.mulf %38, %38 : vector<1x1xf32>
      %40 = arith.mulf %39, %33 : vector<1x1xf32>
      %c0_19 = arith.constant 0 : index
      %c0_20 = arith.constant 0 : index
      %41 = vector.load %arg3[%c0_19, %c0_20] : memref<1x1xf32, #tpu.memory_space<vmem>>, vector<1x1xf32>
      tpu.vector_store %arg3[%c0_19, %c0_20], %40 {strides = array<i32>} : memref<1x1xf32, #tpu.memory_space<vmem>>, vector<1x1xf32>,
    } else {
    }
    return
  }
  func.func @transform_0(%arg0: i32) -> (i32, i32) {
    %c0_i32 = arith.constant 0 : i32
    %c0_i32_0 = arith.constant 0 : i32
    return %arg0, %c0_i32 : i32, i32
  }
  func.func @transform_1(%arg0: i32) -> (i32, i32) {
    %c0_i32 = arith.constant 0 : i32
    %c0_i32_0 = arith.constant 0 : i32
    return %c0_i32, %arg0 : i32, i32
  }
  func.func @transform_2(%arg0: i32) -> (i32, i32) {
    %c0_i32 = arith.constant 0 : i32
    %c0_i32_0 = arith.constant 0 : i32
    %c0_i32_1 = arith.constant 0 : i32
    return %c0_i32, %c0_i32_0 : i32, i32
  }
}

</mosaic_0001>

<llo_original>
// kernel: tpu_custom_call.1
$region0: #{tpu_custom_call.1}
  #allocation0 [shape = 'u32[]', space=smem, size = 0x4, offset = 0x4, fixed_abs, tag = 'smem constant byte address 0x4 - core index']
  #allocation1 [shape = 'u32[144,128]{1,0:T(1,128)}', space=vmem, size = 0x12000, scoped, tag = 'internal scratch']
  %s0 = inlined_call_operand.hbm [shape: f32[8,32], index: 0, kind: input, shape index: {}]
  %s1 = inlined_call_operand.vmem [shape: s32[1,8], index: 1, kind: input, shape index: {}]
  %s2 = inlined_call_operand.hbm [shape: f32[1,1], index: 2, kind: output, shape index: {}]
  %s3 = sld [smem:[#allocation0]]
  $region30: #{tpu_custom_call.1} parent=0
    _
  %s5 = ssub.s32 1, %s3
  %s6 = scalar_select 0, %s5, %s3
  $region1: #{tpu_custom_call.1} parent=0
    #allocation2 [shape = 'u8[4096]{0}', space=vmem, size = 0x1000, scoped, tag = 'input window, operand 0, single buffered']
    #allocation3 [shape = 's32[1]{0}', space=sflag, size = 0x4, scoped, tag = 'scoped memory for tpu_custom_call.1']
    #allocation4 [shape = 's32[1]{0}', space=sflag, size = 0x4, scoped, tag = 'scoped memory for tpu_custom_call.1']
    #allocation5 [shape = 'u8[512]{0}', space=vmem, size = 0x400, scoped, tag = 'output window, operand 0, single buffered']
    %7 = vsyncpa [#allocation3], 0
    %8 = vsyncpa [#allocation4], 0
    // Predicated region
    $region2: #{tpu_custom_call.1} parent=1 // pred_check
      _
    $region3: #{tpu_custom_call.1} parent=1 // pred_check_branch
      %10 = sbr.rel (0) target = $region5
    $region4: #{tpu_custom_call.1} parent=1 // pred_region
      %s12 = ssub.s32 128, 128
      %13 = vsyncadd [#allocation3], %s12
      %s15 = sshll.u32 [#allocation2], 4
      %s16 = int_to_ptr.vmem [resolvable:$true] %s15
      %18 = dma.hbm_to_vmem [thread:$0]  %s0, 128, %s16, [#allocation3]
    $region5: #{tpu_custom_call.1} parent=1 // pred_fallthru
      _
    // Predicated region
    $region6: #{tpu_custom_call.1} parent=1 // pred_check
      _
    $region7: #{tpu_custom_call.1} parent=1 // pred_check_branch
      %20 = sbr.rel (0) target = $region9
    $region8: #{tpu_custom_call.1} parent=1 // pred_region
      _
    $region9: #{tpu_custom_call.1} parent=1 // pred_fallthru
      _
    // Predicated region
    $region10: #{tpu_custom_call.1} parent=1 // pred_check
      _
    $region11: #{tpu_custom_call.1} parent=1 // pred_check_branch
      %22 = sbr.rel (0) target = $region13
    $region12: #{tpu_custom_call.1} parent=1 // pred_region
      %23 = dma.done [#allocation3], 128
    $region13: #{tpu_custom_call.1} parent=1 // pred_fallthru
      _
    %p24 = scmp.eq.s32.totalorder 0, 0
    // Predicated region
    $region14: #{tpu_custom_call.1} parent=1 // pred_check
      %p25 = pneg %p24
    $region15: #{tpu_custom_call.1} parent=1 // pred_check_branch
      %27 = sbr.rel (%p25) target = $region17
    $region16: #{tpu_custom_call.1} parent=1 // pred_region
      %vm28 = vcmask 0
      %29 = vst.msk [vmem:[#allocation5] sm:$0x1] %vm28, 0.0
    $region17: #{tpu_custom_call.1} parent=1 // pred_fallthru
      _
    %v30 = vld [vmem:[#allocation2] sm:$0xff]
    %vm31 = vcmask 261120
    %v32 = vsel %vm31, %v30, -inf
    %33 = vmax.xlane.f32.xlu0 %v32
    %v34 = vpop.xlane.xlu0 %33
    %v35 = vsub.f32 %v30, %v34
    %v36 = vmul.f32 %v35, 1.442695
    %v37 = vpow.pop %v36
    %v38 = vsel %vm31, %v37, 0.0
    %39 = vadd.xlane.f32.xlu0 %v38
    %v40 = vpop.xlane.xlu0 %39
    %v41 = vlog2.pop %v40
    %v42 = vmul.f32 %v41, 0.6931472
    %v43 = vld [vmem:[%s1] sm:$0x1]
    %44 = vxpose.xlu0.b32.start [1/16] %v43, 128
    %45 = vxpose.xlu0.b32.cont [2/16] 0, 128
    %46 = vxpose.xlu0.b32.cont [3/16] 0, 128
    %47 = vxpose.xlu0.b32.cont [4/16] 0, 128
    %48 = vxpose.xlu0.b32.cont [5/16] 0, 128
    %49 = vxpose.xlu0.b32.cont [6/16] 0, 128
    %50 = vxpose.xlu0.b32.cont [7/16] 0, 128
    %51 = vxpose.xlu0.b32.cont [8/16] 0, 128
    %52 = vxpose.xlu0.b32.cont [9/16] 0, 128
    %53 = vxpose.xlu0.b32.cont [10/16] 0, 128
    %54 = vxpose.xlu0.b32.cont [11/16] 0, 128
    %55 = vxpose.xlu0.b32.cont [12/16] 0, 128
    %56 = vxpose.xlu0.b32.cont [13/16] 0, 128
    %57 = vxpose.xlu0.b32.cont [14/16] 0, 128
    %58 = vxpose.xlu0.b32.cont [15/16] 0, 128
    %59 = vxpose.xlu0.b32.end [16/16] 0, 128
    %v60 = vpop.trf.xlu0
    %v61 = vpop.trf.xlu0
    %v62 = vpop.trf.xlu0
    %v63 = vpop.trf.xlu0
    %v64 = vpop.trf.xlu0
    %v65 = vpop.trf.xlu0
    %v66 = vpop.trf.xlu0
    %v67 = vpop.trf.xlu0
    %v68 = vpop.trf.xlu0
    %v69 = vpop.trf.xlu0
    %v70 = vpop.trf.xlu0
    %v71 = vpop.trf.xlu0
    %v72 = vpop.trf.xlu0
    %v73 = vpop.trf.xlu0
    %v74 = vpop.trf.xlu0
    %v75 = vpop.trf.xlu0
    %v76 = vlaneseq
    %v77 = vand.u32 %v76, 127
    %78 = vset.pattern.permute.xlu0 0
    %79 = vperm.xlu0 %78, %v60
    %v80 = vpop.permute.xlu0 %79
    %vm81 = vcmp.eq.s32.totalorder %v77, %v80
    %v82 = vsel %vm81, %v35, 0.0
    %v83 = vsel %vm31, %v82, 0.0
    %84 = vadd.xlane.f32.xlu0 %v83
    %v85 = vpop.xlane.xlu0 %84
    %v86 = vsub.f32 %v42, %v85
    %v87 = vld [vmem:[#allocation5] sm:$0x1]
    %v88 = vrot.slane %v86, 4
    %v89 = vadd.f32 %v86, %v88
    %v90 = vrot.slane %v89, 2
    %v91 = vadd.f32 %v89, %v90
    %v92 = vrot.slane %v91, 1
    %v93 = vadd.f32 %v91, %v92
    %v94 = vadd.f32 %v87, %v93
    %vm95 = vcmask 0
    %96 = vst.msk [vmem:[#allocation5] sm:$0x1] %vm95, %v94
    // Predicated region
    $region18: #{tpu_custom_call.1} parent=1 // pred_check
      %p97 = pneg %p24
    $region19: #{tpu_custom_call.1} parent=1 // pred_check_branch
      %99 = sbr.rel (%p97) target = $region21
    $region20: #{tpu_custom_call.1} parent=1 // pred_region
      %v100 = vld [vmem:[#allocation5] sm:$0x1]
      %v101 = vmul.f32 %v100, 0.125
      %v102 = vsub.f32 0.0, %v101
      %v103 = vmul.f32 %v102, 1.442695
      %v104 = vpow.pop %v103
      %v105 = vsub.f32 1.0, %v104
      %v106 = vmul.f32 %v105, %v105
      %v107 = vmul.f32 %v106, %v101
      %108 = vst.msk [vmem:[#allocation5] sm:$0x1] %vm95, %v107
    $region21: #{tpu_custom_call.1} parent=1 // pred_fallthru
      _
    // Predicated region
    $region22: #{tpu_custom_call.1} parent=1 // pred_check
      _
    $region23: #{tpu_custom_call.1} parent=1 // pred_check_branch
      %110 = sbr.rel (0) target = $region25
    $region24: #{tpu_custom_call.1} parent=1 // pred_region
      %s112 = ssub.s32 16, 16
      %113 = vsyncadd [#allocation4], %s112
      %s115 = sshll.u32 [#allocation5], 4
      %s116 = int_to_ptr.vmem [resolvable:$true] %s115
      %118 = dma.vmem_to_hbm [thread:$0]  %s116, 16, %s2, [#allocation4]
    $region25: #{tpu_custom_call.1} parent=1 // pred_fallthru
      _
    // Predicated region
    $region26: #{tpu_custom_call.1} parent=1 // pred_check
      _
    $region27: #{tpu_custom_call.1} parent=1 // pred_check_branch
      %120 = sbr.rel (0) target = $region29
    $region28: #{tpu_custom_call.1} parent=1 // pred_region
      %121 = dma.done [#allocation4], 16
    $region29: #{tpu_custom_call.1} parent=1 // pred_fallthru
      _
    %122 = vsyncpa [#allocation3], 1
    %123 = vsyncpa [#allocation4], 1

</llo_original>
